<compile_context>
chip_gen: v7x
topology: tpu7x:2x2x1
jax: 0.10.0
libtpu: 0.0.40
codegen_flags: <defaults>
</compile_context>

<pallas_src>
import functools
from math import ceil

import jax
import jax.numpy as jnp
from jax.experimental import pallas as pl
from jax.experimental.pallas import tpu as pltpu


def _axial_pos_emb_kernel(w0_ref, b0_ref, w1_ref, b1_ref, out_ref,
                          *, tile_l0, L1, d_half):
    """One grid step writes rows [i*tile_l0, (i+1)*tile_l0) of the (L0, L1, dim) output."""
    i = pl.program_id(0)
    base = i * tile_l0

    # Left axial table: depends only on the row coordinate i0 (tiled by the grid).
    # int32 -> f32 iota cast is exact for positions < 2^24 (far beyond realistic axial dims).
    r0 = (jax.lax.broadcasted_iota(jnp.int32, (tile_l0, 1, d_half), 0) + base
          ).astype(jnp.float32)
    left = jnp.sin(r0 * w0_ref[...] + b0_ref[...])          # (tile_l0, 1, d_half)

    # Right axial table: depends only on the column coordinate i1 (small, recomputed
    # per tile -- one vreg-scale sin, negligible).
    r1 = jax.lax.broadcasted_iota(jnp.int32, (1, L1, d_half), 1).astype(jnp.float32)
    right = jnp.sin(r1 * w1_ref[...] + b1_ref[...])         # (1, L1, d_half)

    # Broadcast the small tables into the output tile; with d_half % 128 == 0 both
    # stores are unmasked lane-aligned full-width stores.
    out_ref[:, :, :d_half] = jnp.broadcast_to(left, (tile_l0, L1, d_half))
    out_ref[:, :, d_half:] = jnp.broadcast_to(right, (tile_l0, L1, d_half))


def axial_pos_emb(axial_dims, w0, b0, w1, b1, div_factors, mult_factors, dim,
                  *, max_tile_bytes=4 * 1024 * 1024):
    """Pallas wrapper. Returns (prod(axial_dims), dim) float32 embedding."""
    L0, L1 = axial_dims
    assert dim % 2 == 0, "dim must be divisible by num_axial_dims (=2)"
    d_half = dim // 2

    # Fold pos = n / div * mult into the Linear weight:
    #   sin((n/div*mult) * w + b) == sin(n * (w * mult / div) + b).
    # This is an O(d_half) transform done once outside the kernel (not a per-element pass).
    w0s = (jnp.asarray(w0, jnp.float32) * (mult_factors[0] / div_factors[0])
           ).reshape(1, 1, d_half)
    w1s = (jnp.asarray(w1, jnp.float32) * (mult_factors[1] / div_factors[1])
           ).reshape(1, 1, d_half)
    b0r = jnp.asarray(b0, jnp.float32).reshape(1, 1, d_half)
    b1r = jnp.asarray(b1, jnp.float32).reshape(1, 1, d_half)

    # Largest divisor of L0 whose output tile stays within the byte budget:
    # keeps 2x double-buffered tiles well inside v7x's smaller VMEM while staying
    # large enough to amortize the ~0.35us per-grid-step overhead.
    row_bytes = L1 * dim * 4
    max_rows = max(1, max_tile_bytes // row_bytes)
    tile_l0 = 1
    for cand in range(1, L0 + 1):
        if L0 % cand == 0 and cand <= max_rows:
            tile_l0 = cand
    grid = (L0 // tile_l0,)

    kernel = functools.partial(_axial_pos_emb_kernel,
                               tile_l0=tile_l0, L1=L1, d_half=d_half)

    const_spec = pl.BlockSpec((1, 1, d_half), lambda i: (0, 0, 0))

    out = pl.pallas_call(
        kernel,
        out_shape=jax.ShapeDtypeStruct((L0, L1, dim), jnp.float32),
        grid=grid,
        in_specs=[const_spec, const_spec, const_spec, const_spec],
        out_specs=pl.BlockSpec((tile_l0, L1, dim), lambda i: (i, 0, 0)),
        compiler_params=pltpu.CompilerParams(
            dimension_semantics=("parallel",),      # shards tiles across v7x's 2 TCs
            vmem_limit_bytes=32 * 1024 * 1024,
        ),
    )(w0s, b0r, w1s, b1r)

    # (L0, L1, dim) row-major bytes are identical to the PyTorch (L0*L1, dim) layout.
    return out.reshape(L0 * L1, dim)


def derive_axial_dims_from_seq_len(seq_len, num_axial_dims=2):
    """Mirrors ContinuousAxialPositionalEmbedding.derive_axial_dims_from_seq_len.

    Note: prod(result) may exceed seq_len (ceil rounding); like the PyTorch forward,
    axial_pos_emb returns prod(result) rows and the caller slices to seq_len.
    """
    dims = []
    remaining = seq_len
    for i in range(num_axial_dims - 1):
        d = max(1, int(remaining ** (1 / (num_axial_dims - i))))
        dims.append(d)
        remaining = ceil(remaining / d) if d > 0 else 1
    dims.append(max(1, remaining))
    return tuple(dims)


def reference(axial_dims, w0, b0, w1, b1, div_factors, mult_factors):
    """Pure-JAX reference of the PyTorch forward (non-factorized)."""
    L0, L1 = axial_dims
    embs = []
    for L, w, b, dv, mt in zip(axial_dims, (w0, w1), (b0, b1), div_factors, mult_factors):
        pos = jnp.arange(L, dtype=jnp.float32) / dv * mt
        embs.append(jnp.sin(pos[:, None] * w[None, :] + b[None, :]))
    d_half = embs[0].shape[-1]
    e0 = jnp.broadcast_to(embs[0][:, None, :], (L0, L1, d_half))
    e1 = jnp.broadcast_to(embs[1][None, :, :], (L0, L1, d_half))
    return jnp.concatenate([e0, e1], axis=-1).reshape(L0 * L1, 2 * d_half)


if __name__ == "__main__":
    dim = 256                 # d_half = 128 -> lane-aligned half-stores
    num_axial_dims = 2
    seq_len = 64              # derives axial_dims = (8, 8)

    axial_dims = derive_axial_dims_from_seq_len(seq_len, num_axial_dims)
    d_half = dim // num_axial_dims

    # Deterministic parameter init (nn.Linear(1, d_half): weight (d_half, 1), bias (d_half,)).
    key = jax.random.PRNGKey(0)
    k0, k1, k2, k3 = jax.random.split(key, 4)
    bound = 1.0  # 1/sqrt(in_features=1)
    w0 = jax.random.uniform(k0, (d_half,), jnp.float32, -bound, bound)
    b0 = jax.random.uniform(k1, (d_half,), jnp.float32, -bound, bound)
    w1 = jax.random.uniform(k2, (d_half,), jnp.float32, -bound, bound)
    b1 = jax.random.uniform(k3, (d_half,), jnp.float32, -bound, bound)

    div_factors = (2.0, 1.5)   # init_div_factor per axial dim
    mult_factors = (0.5, 1.0)  # init_mult_factor per axial dim

    out = axial_pos_emb(axial_dims, w0, b0, w1, b1, div_factors, mult_factors, dim)
    out = jax.block_until_ready(out)

    ref = reference(axial_dims, w0, b0, w1, b1, div_factors, mult_factors)
    assert out.shape == (axial_dims[0] * axial_dims[1], dim)
    assert jnp.allclose(out, ref, atol=2e-5, rtol=2e-5), "mismatch vs reference"

    print("KERNEL_OK")
</pallas_src>

<mosaic_0001>
module attributes {stable_mosaic.version = 11 : i64} {
  func.func @_axial_pos_emb_kernel(%arg0: i32, %arg1: memref<1x1x128xf32, #tpu.memory_space<vmem>>, %arg2: memref<1x1x128xf32, #tpu.memory_space<vmem>>, %arg3: memref<1x1x128xf32, #tpu.memory_space<vmem>>, %arg4: memref<1x1x128xf32, #tpu.memory_space<vmem>>, %arg5: memref<8x8x256xf32, #tpu.memory_space<vmem>>) attributes {dimension_semantics = [#tpu.dimension_semantics<parallel>], iteration_bounds = array<i64: 1>, scalar_prefetch = 0 : i64, scratch_operands = 0 : i64, tpu.core_type = #tpu.core_type<tc>, window_params = [{pipeline_mode = #tpu.pipeline_mode<synchronous>, transform_indices = @transform_0, window_bounds = array<i64: 1, 1, 128>}, {pipeline_mode = #tpu.pipeline_mode<synchronous>, transform_indices = @transform_1, window_bounds = array<i64: 1, 1, 128>}, {pipeline_mode = #tpu.pipeline_mode<synchronous>, transform_indices = @transform_2, window_bounds = array<i64: 1, 1, 128>}, {pipeline_mode = #tpu.pipeline_mode<synchronous>, transform_indices = @transform_3, window_bounds = array<i64: 1, 1, 128>}, {transform_indices = @transform_4, window_bounds = array<i64: 8, 8, 256>}]} {
    %c8_i32 = arith.constant 8 : i32
    %0 = arith.muli %arg0, %c8_i32 : i32
    %1 = tpu.iota {dimensions = array<i32: 0>} : vector<8x1x128xi32>
    %2 = vector.broadcast %0 : i32 to vector<8x1x128xi32>
    %3 = arith.addi %1, %2 : vector<8x1x128xi32>
    %4 = arith.sitofp %3 : vector<8x1x128xi32> to vector<8x1x128xf32>
    %c0 = arith.constant 0 : index
    %c0_0 = arith.constant 0 : index
    %c0_1 = arith.constant 0 : index
    %5 = vector.load %arg1[%c0, %c0_0, %c0_1] : memref<1x1x128xf32, #tpu.memory_space<vmem>>, vector<1x1x128xf32>
    %6 = vector.broadcast %5 : vector<1x1x128xf32> to vector<8x1x128xf32>
    %7 = arith.mulf %4, %6 : vector<8x1x128xf32>
    %c0_2 = arith.constant 0 : index
    %c0_3 = arith.constant 0 : index
    %c0_4 = arith.constant 0 : index
    %8 = vector.load %arg2[%c0_2, %c0_3, %c0_4] : memref<1x1x128xf32, #tpu.memory_space<vmem>>, vector<1x1x128xf32>
    %9 = vector.broadcast %8 : vector<1x1x128xf32> to vector<8x1x128xf32>
    %10 = arith.addf %7, %9 : vector<8x1x128xf32>
    %11 = math.sin %10 : vector<8x1x128xf32>
    %12 = tpu.iota {dimensions = array<i32: 1>} : vector<1x8x128xi32>
    %13 = arith.sitofp %12 : vector<1x8x128xi32> to vector<1x8x128xf32>
    %c0_5 = arith.constant 0 : index
    %c0_6 = arith.constant 0 : index
    %c0_7 = arith.constant 0 : index
    %14 = vector.load %arg3[%c0_5, %c0_6, %c0_7] : memref<1x1x128xf32, #tpu.memory_space<vmem>>, vector<1x1x128xf32>
    %15 = vector.broadcast %14 : vector<1x1x128xf32> to vector<1x8x128xf32>
    %16 = arith.mulf %13, %15 : vector<1x8x128xf32>
    %c0_8 = arith.constant 0 : index
    %c0_9 = arith.constant 0 : index
    %c0_10 = arith.constant 0 : index
    %17 = vector.load %arg4[%c0_8, %c0_9, %c0_10] : memref<1x1x128xf32, #tpu.memory_space<vmem>>, vector<1x1x128xf32>
    %18 = vector.broadcast %17 : vector<1x1x128xf32> to vector<1x8x128xf32>
    %19 = arith.addf %16, %18 : vector<1x8x128xf32>
    %20 = math.sin %19 : vector<1x8x128xf32>
    %21 = vector.shape_cast %11 : vector<8x1x128xf32> to vector<8x1x128xf32>
    %22 = vector.broadcast %21 : vector<8x1x128xf32> to vector<8x8x128xf32>
    %c0_11 = arith.constant 0 : index
    %c0_12 = arith.constant 0 : index
    %c0_13 = arith.constant 0 : index
    %23 = vector.load %arg5[%c0_11, %c0_12, %c0_13] : memref<8x8x256xf32, #tpu.memory_space<vmem>>, vector<8x8x128xf32>
    tpu.vector_store %arg5[%c0_11, %c0_12, %c0_13], %22 {strides = array<i32>} : memref<8x8x256xf32, #tpu.memory_space<vmem>>, vector<8x8x128xf32>,
    %24 = vector.shape_cast %20 : vector<1x8x128xf32> to vector<1x8x128xf32>
    %25 = vector.broadcast %24 : vector<1x8x128xf32> to vector<8x8x128xf32>
    %c0_14 = arith.constant 0 : index
    %c0_15 = arith.constant 0 : index
    %c128 = arith.constant 128 : index
    %26 = vector.load %arg5[%c0_14, %c0_15, %c128] : memref<8x8x256xf32, #tpu.memory_space<vmem>>, vector<8x8x128xf32>
    tpu.vector_store %arg5[%c0_14, %c0_15, %c128], %25 {strides = array<i32>} : memref<8x8x256xf32, #tpu.memory_space<vmem>>, vector<8x8x128xf32>,
    return
  }
  func.func @transform_0(%arg0: i32) -> (i32, i32, i32) {
    %c0_i32 = arith.constant 0 : i32
    %c0_i32_0 = arith.constant 0 : i32
    %c0_i32_1 = arith.constant 0 : i32
    %c0_i32_2 = arith.constant 0 : i32
    return %c0_i32, %c0_i32_0, %c0_i32_1 : i32, i32, i32
  }
  func.func @transform_1(%arg0: i32) -> (i32, i32, i32) {
    %c0_i32 = arith.constant 0 : i32
    %c0_i32_0 = arith.constant 0 : i32
    %c0_i32_1 = arith.constant 0 : i32
    %c0_i32_2 = arith.constant 0 : i32
    return %c0_i32, %c0_i32_0, %c0_i32_1 : i32, i32, i32
  }
  func.func @transform_2(%arg0: i32) -> (i32, i32, i32) {
    %c0_i32 = arith.constant 0 : i32
    %c0_i32_0 = arith.constant 0 : i32
    %c0_i32_1 = arith.constant 0 : i32
    %c0_i32_2 = arith.constant 0 : i32
    return %c0_i32, %c0_i32_0, %c0_i32_1 : i32, i32, i32
  }
  func.func @transform_3(%arg0: i32) -> (i32, i32, i32) {
    %c0_i32 = arith.constant 0 : i32
    %c0_i32_0 = arith.constant 0 : i32
    %c0_i32_1 = arith.constant 0 : i32
    %c0_i32_2 = arith.constant 0 : i32
    return %c0_i32, %c0_i32_0, %c0_i32_1 : i32, i32, i32
  }
  func.func @transform_4(%arg0: i32) -> (i32, i32, i32) {
    %c0_i32 = arith.constant 0 : i32
    %c0_i32_0 = arith.constant 0 : i32
    %c0_i32_1 = arith.constant 0 : i32
    return %arg0, %c0_i32, %c0_i32_0 : i32, i32, i32
  }
}

</mosaic_0001>

<llo_original>
// kernel: tpu_custom_call.1
$region0: #{tpu_custom_call.1}
  #allocation0 [shape = 'u32[]', space=smem, size = 0x4, offset = 0x4, fixed_abs, tag = 'smem constant byte address 0x4 - core index']
  #allocation1 [shape = 'u32[144,128]{1,0:T(1,128)}', space=vmem, size = 0x12000, scoped, tag = 'internal scratch']
  %s0 = inlined_call_operand.hbm [shape: f32[1,1,128], index: 0, kind: input, shape index: {}]
  %s1 = inlined_call_operand.vmem [shape: f32[1,1,128], index: 1, kind: input, shape index: {}]
  %s2 = inlined_call_operand.vmem [shape: f32[1,1,128], index: 2, kind: input, shape index: {}]
  %s3 = inlined_call_operand.vmem [shape: f32[1,1,128], index: 3, kind: input, shape index: {}]
  %s4 = inlined_call_operand.hbm [shape: f32[8,8,256], index: 4, kind: output, shape index: {}]
  %s5 = sld [smem:[#allocation0]]
  $region30: #{tpu_custom_call.1} parent=0
    _
  %s7 = ssub.s32 1, %s5
  %s8 = scalar_select 0, %s7, %s5
  $region1: #{tpu_custom_call.1} parent=0
    #allocation2 [shape = 'u8[512]{0}', space=vmem, size = 0x400, scoped, tag = 'input window, operand 0, single buffered']
    #allocation3 [shape = 's32[1]{0}', space=sflag, size = 0x4, scoped, tag = 'scoped memory for tpu_custom_call.1']
    #allocation4 [shape = 's32[1]{0}', space=sflag, size = 0x4, scoped, tag = 'scoped memory for tpu_custom_call.1']
    #allocation5 [shape = 'u8[65536]{0}', space=vmem, size = 0x10000, scoped, tag = 'output window, operand 0, single buffered']
    %9 = vsyncpa [#allocation3], 0
    %10 = vsyncpa [#allocation4], 0
    // Predicated region
    $region2: #{tpu_custom_call.1} parent=1 // pred_check
      _
    $region3: #{tpu_custom_call.1} parent=1 // pred_check_branch
      %12 = sbr.rel (0) target = $region5
    $region4: #{tpu_custom_call.1} parent=1 // pred_region
      %s14 = ssub.s32 16, 16
      %15 = vsyncadd [#allocation3], %s14
      %s17 = sshll.u32 [#allocation2], 4
      %s18 = int_to_ptr.vmem [resolvable:$true] %s17
      %20 = dma.hbm_to_vmem [thread:$0]  %s0, 16, %s18, [#allocation3]
    $region5: #{tpu_custom_call.1} parent=1 // pred_fallthru
      _
    // Predicated region
    $region6: #{tpu_custom_call.1} parent=1 // pred_check
      _
    $region7: #{tpu_custom_call.1} parent=1 // pred_check_branch
      %22 = sbr.rel (0) target = $region9
    $region8: #{tpu_custom_call.1} parent=1 // pred_region
      _
    $region9: #{tpu_custom_call.1} parent=1 // pred_fallthru
      _
    // Predicated region
    $region10: #{tpu_custom_call.1} parent=1 // pred_check
      _
    $region11: #{tpu_custom_call.1} parent=1 // pred_check_branch
      %24 = sbr.rel (0) target = $region13
    $region12: #{tpu_custom_call.1} parent=1 // pred_region
      _
    $region13: #{tpu_custom_call.1} parent=1 // pred_fallthru
      _
    // Predicated region
    $region14: #{tpu_custom_call.1} parent=1 // pred_check
      _
    $region15: #{tpu_custom_call.1} parent=1 // pred_check_branch
      %26 = sbr.rel (0) target = $region17
    $region16: #{tpu_custom_call.1} parent=1 // pred_region
      _
    $region17: #{tpu_custom_call.1} parent=1 // pred_fallthru
      _
    // Predicated region
    $region18: #{tpu_custom_call.1} parent=1 // pred_check
      _
    $region19: #{tpu_custom_call.1} parent=1 // pred_check_branch
      %28 = sbr.rel (0) target = $region21
    $region20: #{tpu_custom_call.1} parent=1 // pred_region
      %29 = dma.done [#allocation3], 16
    $region21: #{tpu_custom_call.1} parent=1 // pred_fallthru
      _
    %s30 = smul.u32 0, 8
    %v31 = vstv %s30
    %v32 = vadd.s32 %v31, 1
    %v33 = vadd.s32 %v31, 2
    %v34 = vadd.s32 %v31, 3
    %v35 = vadd.s32 %v31, 4
    %v36 = vadd.s32 %v31, 5
    %v37 = vadd.s32 %v31, 6
    %v38 = vadd.s32 %v31, 7
    %v39 = vcvt.s32.f32 %v31
    %v40 = vcvt.s32.f32 %v32
    %v41 = vcvt.s32.f32 %v33
    %v42 = vcvt.s32.f32 %v34
    %v43 = vcvt.s32.f32 %v35
    %v44 = vcvt.s32.f32 %v36
    %v45 = vcvt.s32.f32 %v37
    %v46 = vcvt.s32.f32 %v38
    %v47 = vld [vmem:[#allocation2] sm:$0x1]
    %v48 = vmul.f32 %v39, %v47
    %v49 = vmul.f32 %v40, %v47
    %v50 = vmul.f32 %v41, %v47
    %v51 = vmul.f32 %v42, %v47
    %v52 = vmul.f32 %v43, %v47
    %v53 = vmul.f32 %v44, %v47
    %v54 = vmul.f32 %v45, %v47
    %v55 = vmul.f32 %v46, %v47
    %v56 = vld [vmem:[%s1] sm:$0x1]
    %v57 = vadd.f32 %v48, %v56
    %v58 = vadd.f32 %v49, %v56
    %v59 = vadd.f32 %v50, %v56
    %v60 = vadd.f32 %v51, %v56
    %v61 = vadd.f32 %v52, %v56
    %v62 = vadd.f32 %v53, %v56
    %v63 = vadd.f32 %v54, %v56
    %v64 = vadd.f32 %v55, %v56
    %v65 = vand.u32 2147483647, %v57
    %vm66 = vcmp.le.f32.partialorder %v65, 0.7853982
    %vm67 = vcmp.lt.s32.totalorder %v57, 0
    %v68 = vand.u32 %v57, 2139095040
    %v69 = vshrl.u32 %v68, 23
    %v70 = vsub.s32 %v69, 127
    %v71 = vand.u32 2147483647, %v57
    %v72 = vand.u32 %v71, 8388607
    %v73 = vor.u32 %v72, 8388608
    %v74 = vsub.s32 0, %v73
    %v75 = vadd.s32 %v70, 1
    %vm76 = vcmp.gt.s32.totalorder %v75, 0
    %v77 = vsel %vm76, %v75, 0
    %v78 = vshrl.u32 %v77, 5
    %v79 = vand.u32 %v77, 31
    %v80 = vsub.s32 32, %v79
    %v81 = vshrl.u32 683565275, %v80
    %v82 = vshll.u32 683565275, %v79
    %v83 = vshrl.u32 2475754826, %v80
    %v84 = vor.u32 %v82, %v83
    %v85 = vshll.u32 2475754826, %v79
    %v86 = vshrl.u32 2131351028, %v80
    %v87 = vor.u32 %v85, %v86
    %v88 = vshll.u32 2131351028, %v79
    %v89 = vshrl.u32 2102212464, %v80
    %v90 = vor.u32 %v88, %v89
    %v91 = vshll.u32 2102212464, %v79
    %v92 = vshrl.u32 920167782, %v80
    %v93 = vor.u32 %v91, %v92
    %v94 = vshll.u32 920167782, %v79
    %v95 = vshrl.u32 1326507024, %v80
    %v96 = vor.u32 %v94, %v95
    %vm97 = vcmp.lt.s32.totalorder %v78, 1
    %vm98 = vcmp.lt.s32.totalorder %v78, 2
    %vm99 = vcmp.lt.s32.totalorder %v78, 3
    %vm100 = vcmp.lt.s32.totalorder %v78, 4
    %v101 = vsel %vm97, %v81, %v84
    %v102 = vsel %vm100, %v90, 2102212464
    %v103 = vsel %vm99, %v87, %v102
    %v104 = vsel %vm98, %v101, %v103
    %v105 = vsel %vm97, %v84, %v87
    %v106 = vsel %vm100, %v93, 920167782
    %v107 = vsel %vm99, %v90, %v106
    %v108 = vsel %vm98, %v105, %v107
    %v109 = vsel %vm97, %v87, %v90
    %v110 = vsel %vm100, %v96, 1326507024
    %v111 = vsel %vm99, %v93, %v110
    %v112 = vsel %vm98, %v109, %v111
    %v113 = vshll.u32 %v73, 8
    %v114 = vmul.u32.u64.compose %v113, %v112
    %v115 = vextract.low.u32 %v114
    %v116 = vextract.high.u32 %v114
    %v117 = vmul.u32.u64.compose %v113, %v108
    %v118 = vextract.low.u32 %v117
    %v119 = vextract.high.u32 %v117
    %v120 = vmul.u32 %v113, %v104
    %v121 = vadd.s32 %v116, %v118
    %vm122 = vc.u32 %v116, %v118
    %v123 = vadd.s32 %v119, 1
    %v124 = vsel %vm122, %v123, %v119
    %v125 = vadd.s32 %v120, %v124
    %v126 = vadd.s32 %v125, 536870912
    %v127 = vshrl.u32 %v126, 30
    %v128 = vshll.u32 %v127, 30
    %v129 = vsub.s32 %v125, %v128
    %vm130 = vcmp.lt.s32.totalorder %v129, 0
    %v131 = vsub.s32 0, %v129
    %v132 = vsel %vm130, %v131, %v129
    %v133 = vclz %v132
    %v134 = vsub.s32 %v133, 2
    %vm135 = vcmp.gt.s32.totalorder 0, %v134
    %v136 = vsel %vm135, 0, %v134
    %v137 = vsub.s32 32, %v136
    %v138 = vshll.u32 %v129, %v136
    %v139 = vshrl.u32 %v121, %v137
    %v140 = vor.u32 %v138, %v139
    %v141 = vsub.s32 4294967266, %v136
    %v142 = vadd.s32 %v141, 127
    %v143 = vshll.u32 %v142, 23
    %v144 = vor.u32 4788187, %v143
    %v145 = vand.u32 2147483647, %v144
    %v147 = vcvt.s32.f32 %v140
    %v148 = vmul.f32 %v147, %v145
    %v149 = vxor.u32 %v148, 2147483648
    %v150 = vsel %vm67, %v149, %v148
    %v151 = vsub.s32 4, %v127
    %v152 = vsel %vm67, %v151, %v127
    %v153 = vsel %vm66, %v57, %v150
    %v154 = vsel %vm66, 0, %v152
    %v155 = vcosq.f32.pop %v153
    %v156 = vsinq.f32.pop %v153
    %vm157 = vweird.f32 %v57
    %v158 = vadd.s32 %v154, 3
    %v159 = vand.u32 %v158, 3
    %vm160 = vcmp.lt.s32.totalorder %v159, 2
    %vm161 = vcmp.eq.s32.totalorder %v159, 0
    %v162 = vxor.u32 %v156, 2147483648
    %v163 = vsel %vm161, %v155, %v162
    %vm164 = vcmp.eq.s32.totalorder %v159, 2
    %v165 = vxor.u32 %v155, 2147483648
    %v166 = vsel %vm164, %v165, %v156
    %v167 = vsel %vm160, %v163, %v166
    %v168 = vsel %vm157, nan, %v167
    %v169 = vand.u32 2147483647, %v58
    %vm170 = vcmp.le.f32.partialorder %v169, 0.7853982
    %vm171 = vcmp.lt.s32.totalorder %v58, 0
    %v172 = vand.u32 %v58, 2139095040
    %v173 = vshrl.u32 %v172, 23
    %v174 = vsub.s32 %v173, 127
    %v175 = vand.u32 2147483647, %v58
    %v176 = vand.u32 %v175, 8388607
    %v177 = vor.u32 %v176, 8388608
    %v178 = vsub.s32 0, %v177
    %v179 = vadd.s32 %v174, 1
    %vm180 = vcmp.gt.s32.totalorder %v179, 0
    %v181 = vsel %vm180, %v179, 0
    %v182 = vshrl.u32 %v181, 5
    %v183 = vand.u32 %v181, 31
    %v184 = vsub.s32 32, %v183
    %v185 = vshrl.u32 683565275, %v184
    %v186 = vshll.u32 683565275, %v183
    %v187 = vshrl.u32 2475754826, %v184
    %v188 = vor.u32 %v186, %v187
    %v189 = vshll.u32 2475754826, %v183
    %v190 = vshrl.u32 2131351028, %v184
    %v191 = vor.u32 %v189, %v190
    %v192 = vshll.u32 2131351028, %v183
    %v193 = vshrl.u32 2102212464, %v184
    %v194 = vor.u32 %v192, %v193
    %v195 = vshll.u32 2102212464, %v183
    %v196 = vshrl.u32 920167782, %v184
    %v197 = vor.u32 %v195, %v196
    %v198 = vshll.u32 920167782, %v183
    %v199 = vshrl.u32 1326507024, %v184
    %v200 = vor.u32 %v198, %v199
    %vm201 = vcmp.lt.s32.totalorder %v182, 1
    %vm202 = vcmp.lt.s32.totalorder %v182, 2
    %vm203 = vcmp.lt.s32.totalorder %v182, 3
    %vm204 = vcmp.lt.s32.totalorder %v182, 4
    %v205 = vsel %vm201, %v185, %v188
    %v206 = vsel %vm204, %v194, 2102212464
    %v207 = vsel %vm203, %v191, %v206
    %v208 = vsel %vm202, %v205, %v207
    %v209 = vsel %vm201, %v188, %v191
    %v210 = vsel %vm204, %v197, 920167782
    %v211 = vsel %vm203, %v194, %v210
    %v212 = vsel %vm202, %v209, %v211
    %v213 = vsel %vm201, %v191, %v194
    %v214 = vsel %vm204, %v200, 1326507024
    %v215 = vsel %vm203, %v197, %v214
    %v216 = vsel %vm202, %v213, %v215
    %v217 = vshll.u32 %v177, 8
    %v218 = vmul.u32.u64.compose %v217, %v216
    %v219 = vextract.low.u32 %v218
    %v220 = vextract.high.u32 %v218
    %v221 = vmul.u32.u64.compose %v217, %v212
    %v222 = vextract.low.u32 %v221
    %v223 = vextract.high.u32 %v221
    %v224 = vmul.u32 %v217, %v208
    %v225 = vadd.s32 %v220, %v222
    %vm226 = vc.u32 %v220, %v222
    %v227 = vadd.s32 %v223, 1
    %v228 = vsel %vm226, %v227, %v223
    %v229 = vadd.s32 %v224, %v228
    %v230 = vadd.s32 %v229, 536870912
    %v231 = vshrl.u32 %v230, 30
    %v232 = vshll.u32 %v231, 30
    %v233 = vsub.s32 %v229, %v232
    %vm234 = vcmp.lt.s32.totalorder %v233, 0
    %v235 = vsub.s32 0, %v233
    %v236 = vsel %vm234, %v235, %v233
    %v237 = vclz %v236
    %v238 = vsub.s32 %v237, 2
    %vm239 = vcmp.gt.s32.totalorder 0, %v238
    %v240 = vsel %vm239, 0, %v238
    %v241 = vsub.s32 32, %v240
    %v242 = vshll.u32 %v233, %v240
    %v243 = vshrl.u32 %v225, %v241
    %v244 = vor.u32 %v242, %v243
    %v245 = vsub.s32 4294967266, %v240
    %v246 = vadd.s32 %v245, 127
    %v247 = vshll.u32 %v246, 23
    %v248 = vor.u32 4788187, %v247
    %v249 = vand.u32 2147483647, %v248
    %v251 = vcvt.s32.f32 %v244
    %v252 = vmul.f32 %v251, %v249
    %v253 = vxor.u32 %v252, 2147483648
    %v254 = vsel %vm171, %v253, %v252
    %v255 = vsub.s32 4, %v231
    %v256 = vsel %vm171, %v255, %v231
    %v257 = vsel %vm170, %v58, %v254
    %v258 = vsel %vm170, 0, %v256
    %v259 = vcosq.f32.pop %v257
    %v260 = vsinq.f32.pop %v257
    %vm261 = vweird.f32 %v58
    %v262 = vadd.s32 %v258, 3
    %v263 = vand.u32 %v262, 3
    %vm264 = vcmp.lt.s32.totalorder %v263, 2
    %vm265 = vcmp.eq.s32.totalorder %v263, 0
    %v266 = vxor.u32 %v260, 2147483648
    %v267 = vsel %vm265, %v259, %v266
    %vm268 = vcmp.eq.s32.totalorder %v263, 2
    %v269 = vxor.u32 %v259, 2147483648
    %v270 = vsel %vm268, %v269, %v260
    %v271 = vsel %vm264, %v267, %v270
    %v272 = vsel %vm261, nan, %v271
    %v273 = vand.u32 2147483647, %v59
    %vm274 = vcmp.le.f32.partialorder %v273, 0.7853982
    %vm275 = vcmp.lt.s32.totalorder %v59, 0
    %v276 = vand.u32 %v59, 2139095040
    %v277 = vshrl.u32 %v276, 23
    %v278 = vsub.s32 %v277, 127
    %v279 = vand.u32 2147483647, %v59
    %v280 = vand.u32 %v279, 8388607
    %v281 = vor.u32 %v280, 8388608
    %v282 = vsub.s32 0, %v281
    %v283 = vadd.s32 %v278, 1
    %vm284 = vcmp.gt.s32.totalorder %v283, 0
    %v285 = vsel %vm284, %v283, 0
    %v286 = vshrl.u32 %v285, 5
    %v287 = vand.u32 %v285, 31
    %v288 = vsub.s32 32, %v287
    %v289 = vshrl.u32 683565275, %v288
    %v290 = vshll.u32 683565275, %v287
    %v291 = vshrl.u32 2475754826, %v288
    %v292 = vor.u32 %v290, %v291
    %v293 = vshll.u32 2475754826, %v287
    %v294 = vshrl.u32 2131351028, %v288
    %v295 = vor.u32 %v293, %v294
    %v296 = vshll.u32 2131351028, %v287
    %v297 = vshrl.u32 2102212464, %v288
    %v298 = vor.u32 %v296, %v297
    %v299 = vshll.u32 2102212464, %v287
    %v300 = vshrl.u32 920167782, %v288
    %v301 = vor.u32 %v299, %v300
    %v302 = vshll.u32 920167782, %v287
    %v303 = vshrl.u32 1326507024, %v288
    %v304 = vor.u32 %v302, %v303
    %vm305 = vcmp.lt.s32.totalorder %v286, 1
    %vm306 = vcmp.lt.s32.totalorder %v286, 2
    %vm307 = vcmp.lt.s32.totalorder %v286, 3
    %vm308 = vcmp.lt.s32.totalorder %v286, 4
    %v309 = vsel %vm305, %v289, %v292
    %v310 = vsel %vm308, %v298, 2102212464
    %v311 = vsel %vm307, %v295, %v310
    %v312 = vsel %vm306, %v309, %v311
    %v313 = vsel %vm305, %v292, %v295
    %v314 = vsel %vm308, %v301, 920167782
    %v315 = vsel %vm307, %v298, %v314
    %v316 = vsel %vm306, %v313, %v315
    %v317 = vsel %vm305, %v295, %v298
    %v318 = vsel %vm308, %v304, 1326507024
    %v319 = vsel %vm307, %v301, %v318
    %v320 = vsel %vm306, %v317, %v319
    %v321 = vshll.u32 %v281, 8
    %v322 = vmul.u32.u64.compose %v321, %v320
    %v323 = vextract.low.u32 %v322
    %v324 = vextract.high.u32 %v322
    %v325 = vmul.u32.u64.compose %v321, %v316
    %v326 = vextract.low.u32 %v325
    %v327 = vextract.high.u32 %v325
    %v328 = vmul.u32 %v321, %v312
    %v329 = vadd.s32 %v324, %v326
    %vm330 = vc.u32 %v324, %v326
    %v331 = vadd.s32 %v327, 1
    %v332 = vsel %vm330, %v331, %v327
    %v333 = vadd.s32 %v328, %v332
    %v334 = vadd.s32 %v333, 536870912
    %v335 = vshrl.u32 %v334, 30
    %v336 = vshll.u32 %v335, 30
    %v337 = vsub.s32 %v333, %v336
    %vm338 = vcmp.lt.s32.totalorder %v337, 0
    %v339 = vsub.s32 0, %v337
    %v340 = vsel %vm338, %v339, %v337
    %v341 = vclz %v340
    %v342 = vsub.s32 %v341, 2
    %vm343 = vcmp.gt.s32.totalorder 0, %v342
    %v344 = vsel %vm343, 0, %v342
    %v345 = vsub.s32 32, %v344
    %v346 = vshll.u32 %v337, %v344
    %v347 = vshrl.u32 %v329, %v345
    %v348 = vor.u32 %v346, %v347
    %v349 = vsub.s32 4294967266, %v344
    %v350 = vadd.s32 %v349, 127
    %v351 = vshll.u32 %v350, 23
    %v352 = vor.u32 4788187, %v351
    %v353 = vand.u32 2147483647, %v352
    %v355 = vcvt.s32.f32 %v348
    %v356 = vmul.f32 %v355, %v353
    %v357 = vxor.u32 %v356, 2147483648
    %v358 = vsel %vm275, %v357, %v356
    %v359 = vsub.s32 4, %v335
    %v360 = vsel %vm275, %v359, %v335
    %v361 = vsel %vm274, %v59, %v358
    %v362 = vsel %vm274, 0, %v360
    %v363 = vcosq.f32.pop %v361
    %v364 = vsinq.f32.pop %v361
    %vm365 = vweird.f32 %v59
    %v366 = vadd.s32 %v362, 3
    %v367 = vand.u32 %v366, 3
    %vm368 = vcmp.lt.s32.totalorder %v367, 2
    %vm369 = vcmp.eq.s32.totalorder %v367, 0
    %v370 = vxor.u32 %v364, 2147483648
    %v371 = vsel %vm369, %v363, %v370
    %vm372 = vcmp.eq.s32.totalorder %v367, 2
    %v373 = vxor.u32 %v363, 2147483648
    %v374 = vsel %vm372, %v373, %v364
    %v375 = vsel %vm368, %v371, %v374
    %v376 = vsel %vm365, nan, %v375
    %v377 = vand.u32 2147483647, %v60
    %vm378 = vcmp.le.f32.partialorder %v377, 0.7853982
    %vm379 = vcmp.lt.s32.totalorder %v60, 0
    %v380 = vand.u32 %v60, 2139095040
    %v381 = vshrl.u32 %v380, 23
    %v382 = vsub.s32 %v381, 127
    %v383 = vand.u32 2147483647, %v60
    %v384 = vand.u32 %v383, 8388607
    %v385 = vor.u32 %v384, 8388608
    %v386 = vsub.s32 0, %v385
    %v387 = vadd.s32 %v382, 1
    %vm388 = vcmp.gt.s32.totalorder %v387, 0
    %v389 = vsel %vm388, %v387, 0
    %v390 = vshrl.u32 %v389, 5
    %v391 = vand.u32 %v389, 31
    %v392 = vsub.s32 32, %v391
    %v393 = vshrl.u32 683565275, %v392
    %v394 = vshll.u32 683565275, %v391
    %v395 = vshrl.u32 2475754826, %v392
    %v396 = vor.u32 %v394, %v395
    %v397 = vshll.u32 2475754826, %v391
    %v398 = vshrl.u32 2131351028, %v392
    %v399 = vor.u32 %v397, %v398
    %v400 = vshll.u32 2131351028, %v391
    %v401 = vshrl.u32 2102212464, %v392
    %v402 = vor.u32 %v400, %v401
    %v403 = vshll.u32 2102212464, %v391
    %v404 = vshrl.u32 920167782, %v392
    %v405 = vor.u32 %v403, %v404
    %v406 = vshll.u32 920167782, %v391
    %v407 = vshrl.u32 1326507024, %v392
    %v408 = vor.u32 %v406, %v407
    %vm409 = vcmp.lt.s32.totalorder %v390, 1
    %vm410 = vcmp.lt.s32.totalorder %v390, 2
    %vm411 = vcmp.lt.s32.totalorder %v390, 3
    %vm412 = vcmp.lt.s32.totalorder %v390, 4
    %v413 = vsel %vm409, %v393, %v396
    %v414 = vsel %vm412, %v402, 2102212464
    %v415 = vsel %vm411, %v399, %v414
    %v416 = vsel %vm410, %v413, %v415
    %v417 = vsel %vm409, %v396, %v399
    %v418 = vsel %vm412, %v405, 920167782
    %v419 = vsel %vm411, %v402, %v418
    %v420 = vsel %vm410, %v417, %v419
    %v421 = vsel %vm409, %v399, %v402
    %v422 = vsel %vm412, %v408, 1326507024
    %v423 = vsel %vm411, %v405, %v422
    %v424 = vsel %vm410, %v421, %v423
    %v425 = vshll.u32 %v385, 8
    %v426 = vmul.u32.u64.compose %v425, %v424
    %v427 = vextract.low.u32 %v426
    %v428 = vextract.high.u32 %v426
    %v429 = vmul.u32.u64.compose %v425, %v420
    %v430 = vextract.low.u32 %v429
    %v431 = vextract.high.u32 %v429
    %v432 = vmul.u32 %v425, %v416
    %v433 = vadd.s32 %v428, %v430
    %vm434 = vc.u32 %v428, %v430
    %v435 = vadd.s32 %v431, 1
    %v436 = vsel %vm434, %v435, %v431
    %v437 = vadd.s32 %v432, %v436
    %v438 = vadd.s32 %v437, 536870912
    %v439 = vshrl.u32 %v438, 30
    %v440 = vshll.u32 %v439, 30
    %v441 = vsub.s32 %v437, %v440
    %vm442 = vcmp.lt.s32.totalorder %v441, 0
    %v443 = vsub.s32 0, %v441
    %v444 = vsel %vm442, %v443, %v441
    %v445 = vclz %v444
    %v446 = vsub.s32 %v445, 2
    %vm447 = vcmp.gt.s32.totalorder 0, %v446
    %v448 = vsel %vm447, 0, %v446
    %v449 = vsub.s32 32, %v448
    %v450 = vshll.u32 %v441, %v448
    %v451 = vshrl.u32 %v433, %v449
    %v452 = vor.u32 %v450, %v451
    %v453 = vsub.s32 4294967266, %v448
    %v454 = vadd.s32 %v453, 127
    %v455 = vshll.u32 %v454, 23
    %v456 = vor.u32 4788187, %v455
    %v457 = vand.u32 2147483647, %v456
    %v459 = vcvt.s32.f32 %v452
    %v460 = vmul.f32 %v459, %v457
    %v461 = vxor.u32 %v460, 2147483648
    %v462 = vsel %vm379, %v461, %v460
    %v463 = vsub.s32 4, %v439
    %v464 = vsel %vm379, %v463, %v439
    %v465 = vsel %vm378, %v60, %v462
    %v466 = vsel %vm378, 0, %v464
    %v467 = vcosq.f32.pop %v465
    %v468 = vsinq.f32.pop %v465
    %vm469 = vweird.f32 %v60
    %v470 = vadd.s32 %v466, 3
    %v471 = vand.u32 %v470, 3
    %vm472 = vcmp.lt.s32.totalorder %v471, 2
    %vm473 = vcmp.eq.s32.totalorder %v471, 0
    %v474 = vxor.u32 %v468, 2147483648
    %v475 = vsel %vm473, %v467, %v474
    %vm476 = vcmp.eq.s32.totalorder %v471, 2
    %v477 = vxor.u32 %v467, 2147483648
    %v478 = vsel %vm476, %v477, %v468
    %v479 = vsel %vm472, %v475, %v478
    %v480 = vsel %vm469, nan, %v479
    %v481 = vand.u32 2147483647, %v61
    %vm482 = vcmp.le.f32.partialorder %v481, 0.7853982
    %vm483 = vcmp.lt.s32.totalorder %v61, 0
    %v484 = vand.u32 %v61, 2139095040
    %v485 = vshrl.u32 %v484, 23
    %v486 = vsub.s32 %v485, 127
    %v487 = vand.u32 2147483647, %v61
    %v488 = vand.u32 %v487, 8388607
    %v489 = vor.u32 %v488, 8388608
    %v490 = vsub.s32 0, %v489
    %v491 = vadd.s32 %v486, 1
    %vm492 = vcmp.gt.s32.totalorder %v491, 0
    %v493 = vsel %vm492, %v491, 0
    %v494 = vshrl.u32 %v493, 5
    %v495 = vand.u32 %v493, 31
    %v496 = vsub.s32 32, %v495
    %v497 = vshrl.u32 683565275, %v496
    %v498 = vshll.u32 683565275, %v495
    %v499 = vshrl.u32 2475754826, %v496
    %v500 = vor.u32 %v498, %v499
    %v501 = vshll.u32 2475754826, %v495
    %v502 = vshrl.u32 2131351028, %v496
    %v503 = vor.u32 %v501, %v502
    %v504 = vshll.u32 2131351028, %v495
    %v505 = vshrl.u32 2102212464, %v496
    %v506 = vor.u32 %v504, %v505
    %v507 = vshll.u32 2102212464, %v495
    %v508 = vshrl.u32 920167782, %v496
    %v509 = vor.u32 %v507, %v508
    %v510 = vshll.u32 920167782, %v495
    %v511 = vshrl.u32 1326507024, %v496
    %v512 = vor.u32 %v510, %v511
    %vm513 = vcmp.lt.s32.totalorder %v494, 1
    %vm514 = vcmp.lt.s32.totalorder %v494, 2
    %vm515 = vcmp.lt.s32.totalorder %v494, 3
    %vm516 = vcmp.lt.s32.totalorder %v494, 4
    %v517 = vsel %vm513, %v497, %v500
    %v518 = vsel %vm516, %v506, 2102212464
    %v519 = vsel %vm515, %v503, %v518
    %v520 = vsel %vm514, %v517, %v519
    %v521 = vsel %vm513, %v500, %v503
    %v522 = vsel %vm516, %v509, 920167782
    %v523 = vsel %vm515, %v506, %v522
    %v524 = vsel %vm514, %v521, %v523
    %v525 = vsel %vm513, %v503, %v506
    %v526 = vsel %vm516, %v512, 1326507024
    %v527 = vsel %vm515, %v509, %v526
    %v528 = vsel %vm514, %v525, %v527
    %v529 = vshll.u32 %v489, 8
    %v530 = vmul.u32.u64.compose %v529, %v528
    %v531 = vextract.low.u32 %v530
    %v532 = vextract.high.u32 %v530
    %v533 = vmul.u32.u64.compose %v529, %v524
    %v534 = vextract.low.u32 %v533
    %v535 = vextract.high.u32 %v533
    %v536 = vmul.u32 %v529, %v520
    %v537 = vadd.s32 %v532, %v534
    %vm538 = vc.u32 %v532, %v534
    %v539 = vadd.s32 %v535, 1
    %v540 = vsel %vm538, %v539, %v535
    %v541 = vadd.s32 %v536, %v540
    %v542 = vadd.s32 %v541, 536870912
    %v543 = vshrl.u32 %v542, 30
    %v544 = vshll.u32 %v543, 30
    %v545 = vsub.s32 %v541, %v544
    %vm546 = vcmp.lt.s32.totalorder %v545, 0
    %v547 = vsub.s32 0, %v545
    %v548 = vsel %vm546, %v547, %v545
    %v549 = vclz %v548
    %v550 = vsub.s32 %v549, 2
    %vm551 = vcmp.gt.s32.totalorder 0, %v550
    %v552 = vsel %vm551, 0, %v550
    %v553 = vsub.s32 32, %v552
    %v554 = vshll.u32 %v545, %v552
    %v555 = vshrl.u32 %v537, %v553
    %v556 = vor.u32 %v554, %v555
    %v557 = vsub.s32 4294967266, %v552
    %v558 = vadd.s32 %v557, 127
    %v559 = vshll.u32 %v558, 23
    %v560 = vor.u32 4788187, %v559
    %v561 = vand.u32 2147483647, %v560
    %v563 = vcvt.s32.f32 %v556
    %v564 = vmul.f32 %v563, %v561
    %v565 = vxor.u32 %v564, 2147483648
    %v566 = vsel %vm483, %v565, %v564
    %v567 = vsub.s32 4, %v543
    %v568 = vsel %vm483, %v567, %v543
    %v569 = vsel %vm482, %v61, %v566
    %v570 = vsel %vm482, 0, %v568
    %v571 = vcosq.f32.pop %v569
    %v572 = vsinq.f32.pop %v569
    %vm573 = vweird.f32 %v61
    %v574 = vadd.s32 %v570, 3
    %v575 = vand.u32 %v574, 3
    %vm576 = vcmp.lt.s32.totalorder %v575, 2
    %vm577 = vcmp.eq.s32.totalorder %v575, 0
    %v578 = vxor.u32 %v572, 2147483648
    %v579 = vsel %vm577, %v571, %v578
    %vm580 = vcmp.eq.s32.totalorder %v575, 2
    %v581 = vxor.u32 %v571, 2147483648
    %v582 = vsel %vm580, %v581, %v572
    %v583 = vsel %vm576, %v579, %v582
    %v584 = vsel %vm573, nan, %v583
    %v585 = vand.u32 2147483647, %v62
    %vm586 = vcmp.le.f32.partialorder %v585, 0.7853982
    %vm587 = vcmp.lt.s32.totalorder %v62, 0
    %v588 = vand.u32 %v62, 2139095040
    %v589 = vshrl.u32 %v588, 23
    %v590 = vsub.s32 %v589, 127
    %v591 = vand.u32 2147483647, %v62
    %v592 = vand.u32 %v591, 8388607
    %v593 = vor.u32 %v592, 8388608
    %v594 = vsub.s32 0, %v593
    %v595 = vadd.s32 %v590, 1
    %vm596 = vcmp.gt.s32.totalorder %v595, 0
    %v597 = vsel %vm596, %v595, 0
    %v598 = vshrl.u32 %v597, 5
    %v599 = vand.u32 %v597, 31
    %v600 = vsub.s32 32, %v599
    %v601 = vshrl.u32 683565275, %v600
    %v602 = vshll.u32 683565275, %v599
    %v603 = vshrl.u32 2475754826, %v600
    %v604 = vor.u32 %v602, %v603
    %v605 = vshll.u32 2475754826, %v599
    %v606 = vshrl.u32 2131351028, %v600
    %v607 = vor.u32 %v605, %v606
    %v608 = vshll.u32 2131351028, %v599
    %v609 = vshrl.u32 2102212464, %v600
    %v610 = vor.u32 %v608, %v609
    %v611 = vshll.u32 2102212464, %v599
    %v612 = vshrl.u32 920167782, %v600
    %v613 = vor.u32 %v611, %v612
    %v614 = vshll.u32 920167782, %v599
    %v615 = vshrl.u32 1326507024, %v600
    %v616 = vor.u32 %v614, %v615
    %vm617 = vcmp.lt.s32.totalorder %v598, 1
    %vm618 = vcmp.lt.s32.totalorder %v598, 2
    %vm619 = vcmp.lt.s32.totalorder %v598, 3
    %vm620 = vcmp.lt.s32.totalorder %v598, 4
    %v621 = vsel %vm617, %v601, %v604
    %v622 = vsel %vm620, %v610, 2102212464
    %v623 = vsel %vm619, %v607, %v622
    %v624 = vsel %vm618, %v621, %v623
    %v625 = vsel %vm617, %v604, %v607
    %v626 = vsel %vm620, %v613, 920167782
    %v627 = vsel %vm619, %v610, %v626
    %v628 = vsel %vm618, %v625, %v627
    %v629 = vsel %vm617, %v607, %v610
    %v630 = vsel %vm620, %v616, 1326507024
    %v631 = vsel %vm619, %v613, %v630
    %v632 = vsel %vm618, %v629, %v631
    %v633 = vshll.u32 %v593, 8
    %v634 = vmul.u32.u64.compose %v633, %v632
    %v635 = vextract.low.u32 %v634
    %v636 = vextract.high.u32 %v634
    %v637 = vmul.u32.u64.compose %v633, %v628
    %v638 = vextract.low.u32 %v637
    %v639 = vextract.high.u32 %v637
    %v640 = vmul.u32 %v633, %v624
    %v641 = vadd.s32 %v636, %v638
    %vm642 = vc.u32 %v636, %v638
    %v643 = vadd.s32 %v639, 1
    %v644 = vsel %vm642, %v643, %v639
    %v645 = vadd.s32 %v640, %v644
    %v646 = vadd.s32 %v645, 536870912
    %v647 = vshrl.u32 %v646, 30
    %v648 = vshll.u32 %v647, 30
    %v649 = vsub.s32 %v645, %v648
    %vm650 = vcmp.lt.s32.totalorder %v649, 0
    %v651 = vsub.s32 0, %v649
    %v652 = vsel %vm650, %v651, %v649
    %v653 = vclz %v652
    %v654 = vsub.s32 %v653, 2
    %vm655 = vcmp.gt.s32.totalorder 0, %v654
    %v656 = vsel %vm655, 0, %v654
    %v657 = vsub.s32 32, %v656
    %v658 = vshll.u32 %v649, %v656
    %v659 = vshrl.u32 %v641, %v657
    %v660 = vor.u32 %v658, %v659
    %v661 = vsub.s32 4294967266, %v656
    %v662 = vadd.s32 %v661, 127
    %v663 = vshll.u32 %v662, 23
    %v664 = vor.u32 4788187, %v663
    %v665 = vand.u32 2147483647, %v664
    %v667 = vcvt.s32.f32 %v660
    %v668 = vmul.f32 %v667, %v665
    %v669 = vxor.u32 %v668, 2147483648
    %v670 = vsel %vm587, %v669, %v668
    %v671 = vsub.s32 4, %v647
    %v672 = vsel %vm587, %v671, %v647
    %v673 = vsel %vm586, %v62, %v670
    %v674 = vsel %vm586, 0, %v672
    %v675 = vcosq.f32.pop %v673
    %v676 = vsinq.f32.pop %v673
    %vm677 = vweird.f32 %v62
    %v678 = vadd.s32 %v674, 3
    %v679 = vand.u32 %v678, 3
    %vm680 = vcmp.lt.s32.totalorder %v679, 2
    %vm681 = vcmp.eq.s32.totalorder %v679, 0
    %v682 = vxor.u32 %v676, 2147483648
    %v683 = vsel %vm681, %v675, %v682
    %vm684 = vcmp.eq.s32.totalorder %v679, 2
    %v685 = vxor.u32 %v675, 2147483648
    %v686 = vsel %vm684, %v685, %v676
    %v687 = vsel %vm680, %v683, %v686
    %v688 = vsel %vm677, nan, %v687
    %v689 = vand.u32 2147483647, %v63
    %vm690 = vcmp.le.f32.partialorder %v689, 0.7853982
    %vm691 = vcmp.lt.s32.totalorder %v63, 0
    %v692 = vand.u32 %v63, 2139095040
    %v693 = vshrl.u32 %v692, 23
    %v694 = vsub.s32 %v693, 127
    %v695 = vand.u32 2147483647, %v63
    %v696 = vand.u32 %v695, 8388607
    %v697 = vor.u32 %v696, 8388608
    %v698 = vsub.s32 0, %v697
    %v699 = vadd.s32 %v694, 1
    %vm700 = vcmp.gt.s32.totalorder %v699, 0
    %v701 = vsel %vm700, %v699, 0
    %v702 = vshrl.u32 %v701, 5
    %v703 = vand.u32 %v701, 31
    %v704 = vsub.s32 32, %v703
    %v705 = vshrl.u32 683565275, %v704
    %v706 = vshll.u32 683565275, %v703
    %v707 = vshrl.u32 2475754826, %v704
    %v708 = vor.u32 %v706, %v707
    %v709 = vshll.u32 2475754826, %v703
    %v710 = vshrl.u32 2131351028, %v704
    %v711 = vor.u32 %v709, %v710
    %v712 = vshll.u32 2131351028, %v703
    %v713 = vshrl.u32 2102212464, %v704
    %v714 = vor.u32 %v712, %v713
    %v715 = vshll.u32 2102212464, %v703
    %v716 = vshrl.u32 920167782, %v704
    %v717 = vor.u32 %v715, %v716
    %v718 = vshll.u32 920167782, %v703
    %v719 = vshrl.u32 1326507024, %v704
    %v720 = vor.u32 %v718, %v719
    %vm721 = vcmp.lt.s32.totalorder %v702, 1
    %vm722 = vcmp.lt.s32.totalorder %v702, 2
    %vm723 = vcmp.lt.s32.totalorder %v702, 3
    %vm724 = vcmp.lt.s32.totalorder %v702, 4
    %v725 = vsel %vm721, %v705, %v708
    %v726 = vsel %vm724, %v714, 2102212464
    %v727 = vsel %vm723, %v711, %v726
    %v728 = vsel %vm722, %v725, %v727
    %v729 = vsel %vm721, %v708, %v711
    %v730 = vsel %vm724, %v717, 920167782
    %v731 = vsel %vm723, %v714, %v730
    %v732 = vsel %vm722, %v729, %v731
    %v733 = vsel %vm721, %v711, %v714
    %v734 = vsel %vm724, %v720, 1326507024
    %v735 = vsel %vm723, %v717, %v734
    %v736 = vsel %vm722, %v733, %v735
    %v737 = vshll.u32 %v697, 8
    %v738 = vmul.u32.u64.compose %v737, %v736
    %v739 = vextract.low.u32 %v738
    %v740 = vextract.high.u32 %v738
    %v741 = vmul.u32.u64.compose %v737, %v732
    %v742 = vextract.low.u32 %v741
    %v743 = vextract.high.u32 %v741
    %v744 = vmul.u32 %v737, %v728
    %v745 = vadd.s32 %v740, %v742
    %vm746 = vc.u32 %v740, %v742
    %v747 = vadd.s32 %v743, 1
    %v748 = vsel %vm746, %v747, %v743
    %v749 = vadd.s32 %v744, %v748
    %v750 = vadd.s32 %v749, 536870912
    %v751 = vshrl.u32 %v750, 30
    %v752 = vshll.u32 %v751, 30
    %v753 = vsub.s32 %v749, %v752
    %vm754 = vcmp.lt.s32.totalorder %v753, 0
    %v755 = vsub.s32 0, %v753
    %v756 = vsel %vm754, %v755, %v753
    %v757 = vclz %v756
    %v758 = vsub.s32 %v757, 2
    %vm759 = vcmp.gt.s32.totalorder 0, %v758
    %v760 = vsel %vm759, 0, %v758
    %v761 = vsub.s32 32, %v760
    %v762 = vshll.u32 %v753, %v760
    %v763 = vshrl.u32 %v745, %v761
    %v764 = vor.u32 %v762, %v763
    %v765 = vsub.s32 4294967266, %v760
    %v766 = vadd.s32 %v765, 127
    %v767 = vshll.u32 %v766, 23
    %v768 = vor.u32 4788187, %v767
    %v769 = vand.u32 2147483647, %v768
    %v771 = vcvt.s32.f32 %v764
    %v772 = vmul.f32 %v771, %v769
    %v773 = vxor.u32 %v772, 2147483648
    %v774 = vsel %vm691, %v773, %v772
    %v775 = vsub.s32 4, %v751
    %v776 = vsel %vm691, %v775, %v751
    %v777 = vsel %vm690, %v63, %v774
    %v778 = vsel %vm690, 0, %v776
    %v779 = vcosq.f32.pop %v777
    %v780 = vsinq.f32.pop %v777
    %vm781 = vweird.f32 %v63
    %v782 = vadd.s32 %v778, 3
    %v783 = vand.u32 %v782, 3
    %vm784 = vcmp.lt.s32.totalorder %v783, 2
    %vm785 = vcmp.eq.s32.totalorder %v783, 0
    %v786 = vxor.u32 %v780, 2147483648
    %v787 = vsel %vm785, %v779, %v786
    %vm788 = vcmp.eq.s32.totalorder %v783, 2
    %v789 = vxor.u32 %v779, 2147483648
    %v790 = vsel %vm788, %v789, %v780
    %v791 = vsel %vm784, %v787, %v790
    %v792 = vsel %vm781, nan, %v791
    %v793 = vand.u32 2147483647, %v64
    %vm794 = vcmp.le.f32.partialorder %v793, 0.7853982
    %vm795 = vcmp.lt.s32.totalorder %v64, 0
    %v796 = vand.u32 %v64, 2139095040
    %v797 = vshrl.u32 %v796, 23
    %v798 = vsub.s32 %v797, 127
    %v799 = vand.u32 2147483647, %v64
    %v800 = vand.u32 %v799, 8388607
    %v801 = vor.u32 %v800, 8388608
    %v802 = vsub.s32 0, %v801
    %v803 = vadd.s32 %v798, 1
    %vm804 = vcmp.gt.s32.totalorder %v803, 0
    %v805 = vsel %vm804, %v803, 0
    %v806 = vshrl.u32 %v805, 5
    %v807 = vand.u32 %v805, 31
    %v808 = vsub.s32 32, %v807
    %v809 = vshrl.u32 683565275, %v808
    %v810 = vshll.u32 683565275, %v807
    %v811 = vshrl.u32 2475754826, %v808
    %v812 = vor.u32 %v810, %v811
    %v813 = vshll.u32 2475754826, %v807
    %v814 = vshrl.u32 2131351028, %v808
    %v815 = vor.u32 %v813, %v814
    %v816 = vshll.u32 2131351028, %v807
    %v817 = vshrl.u32 2102212464, %v808
    %v818 = vor.u32 %v816, %v817
    %v819 = vshll.u32 2102212464, %v807
    %v820 = vshrl.u32 920167782, %v808
    %v821 = vor.u32 %v819, %v820
    %v822 = vshll.u32 920167782, %v807
    %v823 = vshrl.u32 1326507024, %v808
    %v824 = vor.u32 %v822, %v823
    %vm825 = vcmp.lt.s32.totalorder %v806, 1
    %vm826 = vcmp.lt.s32.totalorder %v806, 2
    %vm827 = vcmp.lt.s32.totalorder %v806, 3
    %vm828 = vcmp.lt.s32.totalorder %v806, 4
    %v829 = vsel %vm825, %v809, %v812
    %v830 = vsel %vm828, %v818, 2102212464
    %v831 = vsel %vm827, %v815, %v830
    %v832 = vsel %vm826, %v829, %v831
    %v833 = vsel %vm825, %v812, %v815
    %v834 = vsel %vm828, %v821, 920167782
    %v835 = vsel %vm827, %v818, %v834
    %v836 = vsel %vm826, %v833, %v835
    %v837 = vsel %vm825, %v815, %v818
    %v838 = vsel %vm828, %v824, 1326507024
    %v839 = vsel %vm827, %v821, %v838
    %v840 = vsel %vm826, %v837, %v839
    %v841 = vshll.u32 %v801, 8
    %v842 = vmul.u32.u64.compose %v841, %v840
    %v843 = vextract.low.u32 %v842
    %v844 = vextract.high.u32 %v842
    %v845 = vmul.u32.u64.compose %v841, %v836
    %v846 = vextract.low.u32 %v845
    %v847 = vextract.high.u32 %v845
    %v848 = vmul.u32 %v841, %v832
    %v849 = vadd.s32 %v844, %v846
    %vm850 = vc.u32 %v844, %v846
    %v851 = vadd.s32 %v847, 1
    %v852 = vsel %vm850, %v851, %v847
    %v853 = vadd.s32 %v848, %v852
    %v854 = vadd.s32 %v853, 536870912
    %v855 = vshrl.u32 %v854, 30
    %v856 = vshll.u32 %v855, 30
    %v857 = vsub.s32 %v853, %v856
    %vm858 = vcmp.lt.s32.totalorder %v857, 0
    %v859 = vsub.s32 0, %v857
    %v860 = vsel %vm858, %v859, %v857
    %v861 = vclz %v860
    %v862 = vsub.s32 %v861, 2
    %vm863 = vcmp.gt.s32.totalorder 0, %v862
    %v864 = vsel %vm863, 0, %v862
    %v865 = vsub.s32 32, %v864
    %v866 = vshll.u32 %v857, %v864
    %v867 = vshrl.u32 %v849, %v865
    %v868 = vor.u32 %v866, %v867
    %v869 = vsub.s32 4294967266, %v864
    %v870 = vadd.s32 %v869, 127
    %v871 = vshll.u32 %v870, 23
    %v872 = vor.u32 4788187, %v871
    %v873 = vand.u32 2147483647, %v872
    %v875 = vcvt.s32.f32 %v868
    %v876 = vmul.f32 %v875, %v873
    %v877 = vxor.u32 %v876, 2147483648
    %v878 = vsel %vm795, %v877, %v876
    %v879 = vsub.s32 4, %v855
    %v880 = vsel %vm795, %v879, %v855
    %v881 = vsel %vm794, %v64, %v878
    %v882 = vsel %vm794, 0, %v880
    %v883 = vcosq.f32.pop %v881
    %v884 = vsinq.f32.pop %v881
    %vm885 = vweird.f32 %v64
    %v886 = vadd.s32 %v882, 3
    %v887 = vand.u32 %v886, 3
    %vm888 = vcmp.lt.s32.totalorder %v887, 2
    %vm889 = vcmp.eq.s32.totalorder %v887, 0
    %v890 = vxor.u32 %v884, 2147483648
    %v891 = vsel %vm889, %v883, %v890
    %vm892 = vcmp.eq.s32.totalorder %v887, 2
    %v893 = vxor.u32 %v883, 2147483648
    %v894 = vsel %vm892, %v893, %v884
    %v895 = vsel %vm888, %v891, %v894
    %v896 = vsel %vm885, nan, %v895
    %v897 = vlaneseq
    %v898 = vshrl.u32 %v897, 7
    %v899 = vcvt.s32.f32 %v898
    %v900 = vld [vmem:[%s2] sm:$0x1]
    %v902 = vlaneseq
    %v903 = vshrl.u32 %v902, 7
    %v904 = vsub.s32 0, %v903
    %v905 = vrot.slane %v900, %v904
    %v907 = vmul.f32 %v899, %v905
    %v908 = vld [vmem:[%s3] sm:$0x1]
    %v910 = vlaneseq
    %v911 = vshrl.u32 %v910, 7
    %v912 = vsub.s32 0, %v911
    %v913 = vrot.slane %v908, %v912
    %v915 = vadd.f32 %v907, %v913
    %v916 = vand.u32 2147483647, %v915
    %vm917 = vcmp.le.f32.partialorder %v916, 0.7853982
    %vm918 = vcmp.lt.s32.totalorder %v915, 0
    %v919 = vand.u32 %v915, 2139095040
    %v920 = vshrl.u32 %v919, 23
    %v921 = vsub.s32 %v920, 127
    %v922 = vand.u32 2147483647, %v915
    %v923 = vand.u32 %v922, 8388607
    %v924 = vor.u32 %v923, 8388608
    %v925 = vsub.s32 0, %v924
    %v926 = vadd.s32 %v921, 1
    %vm927 = vcmp.gt.s32.totalorder %v926, 0
    %v928 = vsel %vm927, %v926, 0
    %v929 = vshrl.u32 %v928, 5
    %v930 = vand.u32 %v928, 31
    %v931 = vsub.s32 32, %v930
    %v932 = vshrl.u32 683565275, %v931
    %v933 = vshll.u32 683565275, %v930
    %v934 = vshrl.u32 2475754826, %v931
    %v935 = vor.u32 %v933, %v934
    %v936 = vshll.u32 2475754826, %v930
    %v937 = vshrl.u32 2131351028, %v931
    %v938 = vor.u32 %v936, %v937
    %v939 = vshll.u32 2131351028, %v930
    %v940 = vshrl.u32 2102212464, %v931
    %v941 = vor.u32 %v939, %v940
    %v942 = vshll.u32 2102212464, %v930
    %v943 = vshrl.u32 920167782, %v931
    %v944 = vor.u32 %v942, %v943
    %v945 = vshll.u32 920167782, %v930
    %v946 = vshrl.u32 1326507024, %v931
    %v947 = vor.u32 %v945, %v946
    %vm948 = vcmp.lt.s32.totalorder %v929, 1
    %vm949 = vcmp.lt.s32.totalorder %v929, 2
    %vm950 = vcmp.lt.s32.totalorder %v929, 3
    %vm951 = vcmp.lt.s32.totalorder %v929, 4
    %v952 = vsel %vm948, %v932, %v935
    %v953 = vsel %vm951, %v941, 2102212464
    %v954 = vsel %vm950, %v938, %v953
    %v955 = vsel %vm949, %v952, %v954
    %v956 = vsel %vm948, %v935, %v938
    %v957 = vsel %vm951, %v944, 920167782
    %v958 = vsel %vm950, %v941, %v957
    %v959 = vsel %vm949, %v956, %v958
    %v960 = vsel %vm948, %v938, %v941
    %v961 = vsel %vm951, %v947, 1326507024
    %v962 = vsel %vm950, %v944, %v961
    %v963 = vsel %vm949, %v960, %v962
    %v964 = vshll.u32 %v924, 8
    %v965 = vmul.u32.u64.compose %v964, %v963
    %v966 = vextract.low.u32 %v965
    %v967 = vextract.high.u32 %v965
    %v968 = vmul.u32.u64.compose %v964, %v959
    %v969 = vextract.low.u32 %v968
    %v970 = vextract.high.u32 %v968
    %v971 = vmul.u32 %v964, %v955
    %v972 = vadd.s32 %v967, %v969
    %vm973 = vc.u32 %v967, %v969
    %v974 = vadd.s32 %v970, 1
    %v975 = vsel %vm973, %v974, %v970
    %v976 = vadd.s32 %v971, %v975
    %v977 = vadd.s32 %v976, 536870912
    %v978 = vshrl.u32 %v977, 30
    %v979 = vshll.u32 %v978, 30
    %v980 = vsub.s32 %v976, %v979
    %vm981 = vcmp.lt.s32.totalorder %v980, 0
    %v982 = vsub.s32 0, %v980
    %v983 = vsel %vm981, %v982, %v980
    %v984 = vclz %v983
    %v985 = vsub.s32 %v984, 2
    %vm986 = vcmp.gt.s32.totalorder 0, %v985
    %v987 = vsel %vm986, 0, %v985
    %v988 = vsub.s32 32, %v987
    %v989 = vshll.u32 %v980, %v987
    %v990 = vshrl.u32 %v972, %v988
    %v991 = vor.u32 %v989, %v990
    %v992 = vsub.s32 4294967266, %v987
    %v993 = vadd.s32 %v992, 127
    %v994 = vshll.u32 %v993, 23
    %v995 = vor.u32 4788187, %v994
    %v996 = vand.u32 2147483647, %v995
    %v998 = vcvt.s32.f32 %v991
    %v999 = vmul.f32 %v998, %v996
    %v1000 = vxor.u32 %v999, 2147483648
    %v1001 = vsel %vm918, %v1000, %v999
    %v1002 = vsub.s32 4, %v978
    %v1003 = vsel %vm918, %v1002, %v978
    %v1004 = vsel %vm917, %v915, %v1001
    %v1005 = vsel %vm917, 0, %v1003
    %v1006 = vcosq.f32.pop %v1004
    %v1007 = vsinq.f32.pop %v1004
    %vm1008 = vweird.f32 %v915
    %v1009 = vadd.s32 %v1005, 3
    %v1010 = vand.u32 %v1009, 3
    %vm1011 = vcmp.lt.s32.totalorder %v1010, 2
    %vm1012 = vcmp.eq.s32.totalorder %v1010, 0
    %v1013 = vxor.u32 %v1007, 2147483648
    %v1014 = vsel %vm1012, %v1006, %v1013
    %vm1015 = vcmp.eq.s32.totalorder %v1010, 2
    %v1016 = vxor.u32 %v1006, 2147483648
    %v1017 = vsel %vm1015, %v1016, %v1007
    %v1018 = vsel %vm1011, %v1014, %v1017
    %v1019 = vsel %vm1008, nan, %v1018
    %v1028 = vlaneseq
    %v1029 = vshrl.u32 %v1028, 7
    %v1030 = vsub.s32 0, %v1029
    %v1031 = vrot.slane %v168, %v1030
    %v1032 = vlaneseq
    %v1033 = vshrl.u32 %v1032, 7
    %v1034 = vsub.s32 0, %v1033
    %v1035 = vrot.slane %v272, %v1034
    %v1036 = vlaneseq
    %v1037 = vshrl.u32 %v1036, 7
    %v1038 = vsub.s32 0, %v1037
    %v1039 = vrot.slane %v376, %v1038
    %v1040 = vlaneseq
    %v1041 = vshrl.u32 %v1040, 7
    %v1042 = vsub.s32 0, %v1041
    %v1043 = vrot.slane %v480, %v1042
    %v1044 = vlaneseq
    %v1045 = vshrl.u32 %v1044, 7
    %v1046 = vsub.s32 0, %v1045
    %v1047 = vrot.slane %v584, %v1046
    %v1048 = vlaneseq
    %v1049 = vshrl.u32 %v1048, 7
    %v1050 = vsub.s32 0, %v1049
    %v1051 = vrot.slane %v688, %v1050
    %v1052 = vlaneseq
    %v1053 = vshrl.u32 %v1052, 7
    %v1054 = vsub.s32 0, %v1053
    %v1055 = vrot.slane %v792, %v1054
    %v1056 = vlaneseq
    %v1057 = vshrl.u32 %v1056, 7
    %v1058 = vsub.s32 0, %v1057
    %v1059 = vrot.slane %v896, %v1058
    %1068 = vst [vmem:[#allocation5] sm:$0xff] %v1031
    %1069 = vst [vmem:[#allocation5 + $0x10] sm:$0xff] %v1035
    %1070 = vst [vmem:[#allocation5 + $0x20] sm:$0xff] %v1039
    %1071 = vst [vmem:[#allocation5 + $0x30] sm:$0xff] %v1043
    %1072 = vst [vmem:[#allocation5 + $0x40] sm:$0xff] %v1047
    %1073 = vst [vmem:[#allocation5 + $0x50] sm:$0xff] %v1051
    %1074 = vst [vmem:[#allocation5 + $0x60] sm:$0xff] %v1055
    %1075 = vst [vmem:[#allocation5 + $0x70] sm:$0xff] %v1059
    %1076 = vst [vmem:[#allocation5 + $0x8] sm:$0xff] %v1019
    %1077 = vst [vmem:[#allocation5 + $0x18] sm:$0xff] %v1019
    %1078 = vst [vmem:[#allocation5 + $0x28] sm:$0xff] %v1019
    %1079 = vst [vmem:[#allocation5 + $0x38] sm:$0xff] %v1019
    %1080 = vst [vmem:[#allocation5 + $0x48] sm:$0xff] %v1019
    %1081 = vst [vmem:[#allocation5 + $0x58] sm:$0xff] %v1019
    %1082 = vst [vmem:[#allocation5 + $0x68] sm:$0xff] %v1019
    %1083 = vst [vmem:[#allocation5 + $0x78] sm:$0xff] %v1019
    // Predicated region
    $region22: #{tpu_custom_call.1} parent=1 // pred_check
      _
    $region23: #{tpu_custom_call.1} parent=1 // pred_check_branch
      %1085 = sbr.rel (0) target = $region25
    $region24: #{tpu_custom_call.1} parent=1 // pred_region
      %s1087 = ssub.s32 2048, 2048
      %1088 = vsyncadd [#allocation4], %s1087
      %s1089 = sshll.u32 [#allocation5], 4
      %s1090 = int_to_ptr.vmem [resolvable:$true] %s1089
      %1095 = dma.vmem_to_hbm [thread:$0]  %s1090, 2048, %s4, [#allocation4], 256, 256, 16
    $region25: #{tpu_custom_call.1} parent=1 // pred_fallthru
      _
    // Predicated region
    $region26: #{tpu_custom_call.1} parent=1 // pred_check
      _
    $region27: #{tpu_custom_call.1} parent=1 // pred_check_branch
      %1097 = sbr.rel (0) target = $region29
    $region28: #{tpu_custom_call.1} parent=1 // pred_region
      %1098 = dma.done [#allocation4], 2048
    $region29: #{tpu_custom_call.1} parent=1 // pred_fallthru
      _
    %1099 = vsyncpa [#allocation3], 1
    %1100 = vsyncpa [#allocation4], 1

</llo_original>
